<compile_context>
chip_gen: v7x
topology: tpu7x:2x2x1
jax: 0.10.0
libtpu: 0.0.40
codegen_flags: <defaults>
</compile_context>

<pallas_src>
import math
import functools

import jax
import jax.numpy as jnp
from jax import lax
from jax.experimental import pallas as pl
from jax.experimental.pallas import tpu as pltpu


def _self_attn_kernel(x_ref, w_ref, b_ref, mask_ref, o_ref, kv_ref, ctx_ref,
                      *, group_size, head_dim, q_tile, exp_dtype):
    """One grid step = (head-group g, batch b, query-tile q).

    x_ref:    (1, S, H)      hidden states for batch b
    w_ref:    (1, H, 3*Gd)   fused [Wq/sqrt(dh) | Wk | Wv] for group g (bf16)
    b_ref:    (1, 1, 3*Gd)   fused [bq/sqrt(dh) | bk | bv] (f32)
    mask_ref: (1, 1, S)      additive key mask for batch b
    o_ref:    (1, TQ, Gd)    context slice of the (B, S, H) output
    kv_ref:   (S, 2*Gd)      VMEM scratch: K|V for (g, b), computed at q == 0
    ctx_ref:  (TQ, Gd)       VMEM f32 scratch: per-group context accumulator
    """
    Gd = group_size * head_dim
    cd = kv_ref.dtype                        # MXU compute dtype (bf16)
    qi = pl.program_id(2)

    w = w_ref[0]                             # (H, 3Gd), compute dtype
    b = b_ref[0]                             # (1, 3Gd), f32

    # K/V projection once per (head-group, batch); stays resident in the VMEM
    # scratch across the query-tile axis (q axis is "arbitrary"/sequential).
    @pl.when(qi == 0)
    def _():
        xc = x_ref[0].astype(cd)             # (S, H)
        kv = jnp.dot(xc, w[:, Gd:], preferred_element_type=jnp.float32)
        kv_ref[...] = (kv + b[:, Gd:]).astype(cd)

    # Q projection for this query tile only (1/sqrt(dh) folded into Wq / bq).
    row0 = pl.multiple_of(qi * q_tile, q_tile)
    xq = x_ref[0, pl.ds(row0, q_tile), :].astype(cd)             # (TQ, H)
    q = (jnp.dot(xq, w[:, :Gd], preferred_element_type=jnp.float32)
         + b[:, :Gd]).astype(cd)                                 # (TQ, Gd)

    mask = mask_ref[0]                                           # (1, S)

    for h in range(group_size):                                  # unrolled
        lo = h * head_dim
        q_h = q[:, lo:lo + head_dim]                             # (TQ, dh)
        k_h = kv_ref[:, lo:lo + head_dim]                        # (S, dh)
        v_h = kv_ref[:, Gd + lo:Gd + lo + head_dim]              # (S, dh)

        # attention_scores = (Q / sqrt(dh)) @ K^T + mask (scale pre-folded)
        s = lax.dot_general(q_h, k_h, (((1,), (1,)), ((), ())),
                            preferred_element_type=jnp.float32)  # (TQ, S)
        s = s + mask

        # softmax over keys; exp optionally in bf16 (EUP win on v6e/v7x),
        # normalization deferred to the (TQ, dh) context below.
        m = jnp.max(s, axis=-1, keepdims=True)
        p = jnp.exp((s - m).astype(exp_dtype))
        l = jnp.sum(p.astype(jnp.float32), axis=-1, keepdims=True)

        ctx = jnp.dot(p.astype(cd), v_h, preferred_element_type=jnp.float32)
        ctx_ref[:, lo:lo + head_dim] = ctx * pl.reciprocal(l, approx=True)

    # Single lane-dense store of the whole head group.
    o_ref[0] = ctx_ref[...].astype(o_ref.dtype)


def pick_group_size(num_heads, head_dim, target_cols=256):
    """Largest divisor g of num_heads with (g*head_dim) % 128 == 0 and
    g*head_dim <= target_cols; falls back to all heads in one group
    (Gd == H, which always satisfies the last-dim tiling rule)."""
    for g in range(num_heads, 0, -1):
        gd = g * head_dim
        if num_heads % g == 0 and gd <= target_cols and gd % 128 == 0:
            return g
    return num_heads


def pick_q_tile(seq_len, target=256):
    """Largest multiple-of-8 divisor of seq_len that is <= target, else
    seq_len itself (single query tile)."""
    if seq_len <= target:
        return seq_len
    for tq in range(target - target % 8, 7, -8):
        if seq_len % tq == 0:
            return tq
    return seq_len


def prepare_qkv_params(wq, bq, wk, bk, wv, bv, *, num_heads, group_size,
                       compute_dtype=jnp.bfloat16):
    """One-time weight prep (cache the result across calls).

    Weights are [in_features, out_features] (y = x @ W + b). Returns
      w_qkv: (ng, H, 3*Gd)  columns [Wq/sqrt(dh) | Wk | Wv], compute_dtype
      b_qkv: (ng, 1, 3*Gd)  f32
    """
    H = wq.shape[0]
    dh = H // num_heads
    ng = num_heads // group_size
    Gd = group_size * dh
    inv = 1.0 / math.sqrt(dh)

    def grp_w(w):   # (H, H) -> (ng, H, Gd)
        return jnp.transpose(w.reshape(H, ng, Gd), (1, 0, 2))

    def grp_b(b):   # (H,) -> (ng, 1, Gd)
        return b.reshape(ng, 1, Gd)

    w_qkv = jnp.concatenate([grp_w(wq) * inv, grp_w(wk), grp_w(wv)], axis=-1)
    b_qkv = jnp.concatenate([grp_b(bq) * inv, grp_b(bk), grp_b(bv)], axis=-1)
    return w_qkv.astype(compute_dtype), b_qkv.astype(jnp.float32)


def bert_self_attention(hidden_states, w_qkv, b_qkv, attention_mask=None, *,
                        num_heads, group_size, q_tile=None,
                        exp_dtype=jnp.bfloat16):
    """hidden_states: (B, S, H); w_qkv/b_qkv from prepare_qkv_params;
    attention_mask: HF additive extended mask (B, 1, 1, S) or None.
    Returns context_layer (B, S, H)."""
    B, S, H = hidden_states.shape
    assert H % num_heads == 0 and num_heads % group_size == 0
    dh = H // num_heads
    ng = num_heads // group_size
    Gd = group_size * dh
    assert Gd % 128 == 0 or Gd == H, "Gd must be 128-aligned or span all heads"
    if q_tile is None:
        q_tile = pick_q_tile(S)
    assert S % q_tile == 0 and (q_tile == S or q_tile % 8 == 0)
    nq = S // q_tile

    if attention_mask is None:
        mask2d = jnp.zeros((B, 1, S), dtype=jnp.float32)
    else:
        mask2d = attention_mask.reshape(B, 1, S).astype(jnp.float32)

    compute_dtype = w_qkv.dtype
    in_bytes = jnp.dtype(hidden_states.dtype).itemsize
    c_bytes = jnp.dtype(compute_dtype).itemsize

    # Advisory cost estimate for the XLA scheduler.
    flops = 2 * B * S * H * 3 * H + 4 * B * num_heads * S * S * dh
    transcendentals = B * num_heads * S * S
    bytes_accessed = (ng * B * S * H * in_bytes
                      + int(w_qkv.size) * c_bytes + int(b_qkv.size) * 4
                      + ng * int(mask2d.size) * 4
                      + B * S * H * in_bytes)

    # Rough per-step VMEM working set (double-buffered blocks + scratch +
    # in-kernel temporaries); only raise the scoped-VMEM limit when needed.
    vmem_est = (2 * (S * H * in_bytes + H * 3 * Gd * c_bytes
                     + q_tile * Gd * in_bytes)
                + S * 2 * Gd * c_bytes + q_tile * Gd * 4
                + S * H * c_bytes + 3 * q_tile * S * 4 + q_tile * Gd * 4)
    vmem_limit = None
    if vmem_est > 16 * 1024 * 1024:
        vmem_limit = int(min(max(2 * vmem_est, 32 * 1024 * 1024),
                             64 * 1024 * 1024))

    kernel = functools.partial(_self_attn_kernel, group_size=group_size,
                               head_dim=dh, q_tile=q_tile, exp_dtype=exp_dtype)

    return pl.pallas_call(
        kernel,
        out_shape=jax.ShapeDtypeStruct((B, S, H), hidden_states.dtype),
        grid_spec=pltpu.PrefetchScalarGridSpec(
            num_scalar_prefetch=0,
            # Head-group axis outermost: the fused weight block index is
            # constant across the inner axes, so it is DMA'd only ng times.
            # Query-tile axis innermost + "arbitrary": the K/V scratch
            # written at q == 0 is reused by the remaining query tiles.
            grid=(ng, B, nq),
            in_specs=[
                pl.BlockSpec((1, S, H), lambda g, b, q: (b, 0, 0)),        # x
                pl.BlockSpec((1, H, 3 * Gd), lambda g, b, q: (g, 0, 0)),   # W
                pl.BlockSpec((1, 1, 3 * Gd), lambda g, b, q: (g, 0, 0)),   # b
                pl.BlockSpec((1, 1, S), lambda g, b, q: (b, 0, 0)),        # mask
            ],
            out_specs=pl.BlockSpec((1, q_tile, Gd), lambda g, b, q: (b, q, g)),
            scratch_shapes=[
                pltpu.VMEM((S, 2 * Gd), compute_dtype),   # K|V for (g, b)
                pltpu.VMEM((q_tile, Gd), jnp.float32),    # context accumulator
            ],
        ),
        compiler_params=pltpu.CompilerParams(
            dimension_semantics=("parallel", "parallel", "arbitrary"),
            vmem_limit_bytes=vmem_limit),
        cost_estimate=pl.CostEstimate(flops=flops,
                                      transcendentals=transcendentals,
                                      bytes_accessed=bytes_accessed),
    )(hidden_states, w_qkv, b_qkv, mask2d)


def _reference(hidden_states, wq, bq, wk, bk, wv, bv, attention_mask,
               *, num_heads):
    B, S, H = hidden_states.shape
    dh = H // num_heads

    def t4s(x):  # transpose_for_scores
        return jnp.transpose(x.reshape(B, S, num_heads, dh), (0, 2, 1, 3))

    q = t4s(hidden_states @ wq + bq)
    k = t4s(hidden_states @ wk + bk)
    v = t4s(hidden_states @ wv + bv)
    scores = jnp.einsum("bhqd,bhkd->bhqk", q, k) / math.sqrt(dh)
    if attention_mask is not None:
        scores = scores + attention_mask
    probs = jax.nn.softmax(scores, axis=-1)
    ctx = jnp.einsum("bhqk,bhkd->bhqd", probs, v)
    return jnp.transpose(ctx, (0, 2, 1, 3)).reshape(B, S, H)


if __name__ == "__main__":
    B, S, H, NH = 2, 16, 32, 4
    DH = H // NH

    key = jax.random.PRNGKey(0)
    ks = jax.random.split(key, 7)
    hidden_states = jax.random.normal(ks[0], (B, S, H), dtype=jnp.float32)
    wq = 0.125 * jax.random.normal(ks[1], (H, H), dtype=jnp.float32)
    wk = 0.125 * jax.random.normal(ks[2], (H, H), dtype=jnp.float32)
    wv = 0.125 * jax.random.normal(ks[3], (H, H), dtype=jnp.float32)
    bq = 0.05 * jax.random.normal(ks[4], (H,), dtype=jnp.float32)
    bk = 0.05 * jax.random.normal(ks[5], (H,), dtype=jnp.float32)
    bv = 0.05 * jax.random.normal(ks[6], (H,), dtype=jnp.float32)

    # HF "extended attention mask": last 3 key positions of batch 1 are pad.
    pad = jnp.ones((B, S), dtype=jnp.float32).at[1, -3:].set(0.0)
    attention_mask = (1.0 - pad)[:, None, None, :] * (-10000.0)   # (B,1,1,S)

    G = pick_group_size(NH, DH)          # -> all heads in one group (Gd == H)
    # One-time weight prep (cached / reused across calls).
    w_qkv, b_qkv = prepare_qkv_params(wq, bq, wk, bk, wv, bv,
                                      num_heads=NH, group_size=G)

    # q_tile=8 exercises the query-tile axis (nq=2) even at this small shape.
    out = bert_self_attention(hidden_states, w_qkv, b_qkv, attention_mask,
                              num_heads=NH, group_size=G, q_tile=8)
    out = jax.block_until_ready(out)

    ref = _reference(hidden_states, wq, bq, wk, bk, wv, bv,
                     attention_mask, num_heads=NH)
    assert out.shape == (B, S, H)
    # Tolerance reflects the bf16 MXU / bf16-exp / approx-reciprocal fast path
    # (documented numerics delta vs the exact f32 HF softmax).
    assert jnp.allclose(out, ref, atol=2e-2, rtol=2e-2), float(
        jnp.max(jnp.abs(out - ref)))

    print("KERNEL_OK")
</pallas_src>

<mosaic_0001>
module attributes {stable_mosaic.version = 11 : i64} {
  func.func @_self_attn_kernel(%arg0: i32, %arg1: i32, %arg2: i32, %arg3: memref<1x16x32xf32, #tpu.memory_space<vmem>>, %arg4: memref<1x32x96xbf16, #tpu.memory_space<vmem>>, %arg5: memref<1x1x96xf32, #tpu.memory_space<vmem>>, %arg6: memref<1x1x16xf32, #tpu.memory_space<vmem>>, %arg7: memref<1x8x32xf32, #tpu.memory_space<vmem>>, %arg8: memref<16x64xbf16, #tpu.memory_space<vmem>>, %arg9: memref<8x32xf32, #tpu.memory_space<vmem>>) attributes {dimension_semantics = [#tpu.dimension_semantics<parallel>, #tpu.dimension_semantics<parallel>, #tpu.dimension_semantics<arbitrary>], iteration_bounds = array<i64: 1, 2, 2>, scalar_prefetch = 0 : i64, scratch_operands = 2 : i64, tpu.core_type = #tpu.core_type<tc>, window_params = [{transform_indices = @transform_0, window_bounds = array<i64: 1, 16, 32>}, {transform_indices = @transform_1, window_bounds = array<i64: 1, 32, 96>}, {transform_indices = @transform_2, window_bounds = array<i64: 1, 1, 96>}, {transform_indices = @transform_3, window_bounds = array<i64: 1, 1, 16>}, {transform_indices = @transform_4, window_bounds = array<i64: 1, 8, 32>}]} {
    %c0 = arith.constant 0 : index
    %c0_0 = arith.constant 0 : index
    %c0_1 = arith.constant 0 : index
    %0 = vector.load %arg4[%c0, %c0_0, %c0_1] : memref<1x32x96xbf16, #tpu.memory_space<vmem>>, vector<1x32x96xbf16>
    %1 = vector.shape_cast %0 : vector<1x32x96xbf16> to vector<32x96xbf16>
    %c0_2 = arith.constant 0 : index
    %c0_3 = arith.constant 0 : index
    %c0_4 = arith.constant 0 : index
    %2 = vector.load %arg5[%c0_2, %c0_3, %c0_4] : memref<1x1x96xf32, #tpu.memory_space<vmem>>, vector<1x1x96xf32>
    %3 = vector.shape_cast %2 : vector<1x1x96xf32> to vector<1x96xf32>
    %c0_i32 = arith.constant 0 : i32
    %4 = arith.cmpi eq, %arg2, %c0_i32 : i32
    %5 = arith.extui %4 : i1 to i32
    %c0_i32_5 = arith.constant 0 : i32
    %6 = arith.cmpi ne, %5, %c0_i32_5 : i32
    scf.if %6 {
      %c0_49 = arith.constant 0 : index
      %c0_50 = arith.constant 0 : index
      %c0_51 = arith.constant 0 : index
      %105 = vector.load %arg3[%c0_49, %c0_50, %c0_51] : memref<1x16x32xf32, #tpu.memory_space<vmem>>, vector<1x16x32xf32>
      %106 = vector.shape_cast %105 : vector<1x16x32xf32> to vector<16x32xf32>
      %107 = arith.truncf %106 : vector<16x32xf32> to vector<16x32xbf16>
      %108 = vector.extract_strided_slice %1 {offsets = [0, 32], sizes = [32, 64], strides = [1, 1]} : vector<32x96xbf16> to vector<32x64xbf16>
      %cst_52 = arith.constant dense<0.000000e+00> : vector<16x64xf32>
      %109 = tpu.matmul %107, %108, %cst_52 {dimension_numbers = #tpu.dot_dimension_numbers<[1], [0], [0], [1], [0, 0, 1, 1], [], []>} : vector<16x32xbf16>, vector<32x64xbf16>, vector<16x64xf32> -> vector<16x64xf32>
      %110 = vector.extract_strided_slice %3 {offsets = [0, 32], sizes = [1, 64], strides = [1, 1]} : vector<1x96xf32> to vector<1x64xf32>
      %111 = vector.broadcast %110 : vector<1x64xf32> to vector<16x64xf32>
      %112 = arith.addf %109, %111 : vector<16x64xf32>
      %113 = arith.truncf %112 : vector<16x64xf32> to vector<16x64xbf16>
      %c0_53 = arith.constant 0 : index
      %c0_54 = arith.constant 0 : index
      %114 = vector.load %arg8[%c0_53, %c0_54] : memref<16x64xbf16, #tpu.memory_space<vmem>>, vector<16x64xbf16>
      tpu.vector_store %arg8[%c0_53, %c0_54], %113 {strides = array<i32>} : memref<16x64xbf16, #tpu.memory_space<vmem>>, vector<16x64xbf16>,
    } else {
    }
    %c8_i32 = arith.constant 8 : i32
    %7 = arith.muli %arg2, %c8_i32 : i32
    %8 = tpu.assume_multiple %7, 8 : i32
    %c0_6 = arith.constant 0 : index
    %9 = arith.index_cast %8 : i32 to index
    %c0_7 = arith.constant 0 : index
    %10 = vector.load %arg3[%c0_6, %9, %c0_7] : memref<1x16x32xf32, #tpu.memory_space<vmem>>, vector<1x8x32xf32>
    %11 = vector.shape_cast %10 : vector<1x8x32xf32> to vector<8x32xf32>
    %12 = arith.truncf %11 : vector<8x32xf32> to vector<8x32xbf16>
    %13 = vector.extract_strided_slice %1 {offsets = [0, 0], sizes = [32, 32], strides = [1, 1]} : vector<32x96xbf16> to vector<32x32xbf16>
    %cst = arith.constant dense<0.000000e+00> : vector<8x32xf32>
    %14 = tpu.matmul %12, %13, %cst {dimension_numbers = #tpu.dot_dimension_numbers<[1], [0], [0], [1], [0, 0, 1, 1], [], []>} : vector<8x32xbf16>, vector<32x32xbf16>, vector<8x32xf32> -> vector<8x32xf32>
    %15 = vector.extract_strided_slice %3 {offsets = [0, 0], sizes = [1, 32], strides = [1, 1]} : vector<1x96xf32> to vector<1x32xf32>
    %16 = vector.broadcast %15 : vector<1x32xf32> to vector<8x32xf32>
    %17 = arith.addf %14, %16 : vector<8x32xf32>
    %18 = arith.truncf %17 : vector<8x32xf32> to vector<8x32xbf16>
    %c0_8 = arith.constant 0 : index
    %c0_9 = arith.constant 0 : index
    %c0_10 = arith.constant 0 : index
    %19 = vector.load %arg6[%c0_8, %c0_9, %c0_10] : memref<1x1x16xf32, #tpu.memory_space<vmem>>, vector<1x1x16xf32>
    %20 = vector.shape_cast %19 : vector<1x1x16xf32> to vector<1x16xf32>
    %21 = vector.extract_strided_slice %18 {offsets = [0, 0], sizes = [8, 8], strides = [1, 1]} : vector<8x32xbf16> to vector<8x8xbf16>
    %c0_11 = arith.constant 0 : index
    %c0_12 = arith.constant 0 : index
    %22 = vector.load %arg8[%c0_11, %c0_12] : memref<16x64xbf16, #tpu.memory_space<vmem>>, vector<16x8xbf16>
    %c0_13 = arith.constant 0 : index
    %c32 = arith.constant 32 : index
    %23 = vector.load %arg8[%c0_13, %c32] : memref<16x64xbf16, #tpu.memory_space<vmem>>, vector<16x8xbf16>
    %cst_14 = arith.constant dense<0.000000e+00> : vector<8x16xf32>
    %24 = tpu.matmul %21, %22, %cst_14 {dimension_numbers = #tpu.dot_dimension_numbers<[1], [1], [0], [0], [0, 0, 1, 0], [], []>} : vector<8x8xbf16>, vector<16x8xbf16>, vector<8x16xf32> -> vector<8x16xf32>
    %25 = vector.broadcast %20 : vector<1x16xf32> to vector<8x16xf32>
    %26 = arith.addf %24, %25 : vector<8x16xf32>
    %cst_15 = arith.constant dense<0xFF800000> : vector<8xf32>
    %27 = vector.multi_reduction <maximumf>, %26, %cst_15 [1] : vector<8x16xf32> to vector<8xf32>
    %28 = vector.shape_cast %27 : vector<8xf32> to vector<8x1xf32>
    %29 = vector.broadcast %28 : vector<8x1xf32> to vector<8x16xf32>
    %30 = arith.subf %26, %29 : vector<8x16xf32>
    %31 = arith.truncf %30 : vector<8x16xf32> to vector<8x16xbf16>
    %32 = math.exp %31 : vector<8x16xbf16>
    %33 = arith.extf %32 : vector<8x16xbf16> to vector<8x16xf32>
    %cst_16 = arith.constant dense<0.000000e+00> : vector<8xf32>
    %34 = vector.multi_reduction <add>, %33, %cst_16 [1] : vector<8x16xf32> to vector<8xf32>
    %35 = vector.shape_cast %34 : vector<8xf32> to vector<8x1xf32>
    %cst_17 = arith.constant dense<0.000000e+00> : vector<8x8xf32>
    %36 = tpu.matmul %32, %23, %cst_17 {dimension_numbers = #tpu.dot_dimension_numbers<[1], [0], [0], [1], [0, 0, 1, 1], [], []>} : vector<8x16xbf16>, vector<16x8xbf16>, vector<8x8xf32> -> vector<8x8xf32>
    %37 = tpu.reciprocal %35 {approx = true} : vector<8x1xf32> -> vector<8x1xf32>
    %38 = vector.broadcast %37 : vector<8x1xf32> to vector<8x8xf32>
    %39 = arith.mulf %36, %38 : vector<8x8xf32>
    %c0_18 = arith.constant 0 : index
    %c0_19 = arith.constant 0 : index
    %40 = vector.load %arg9[%c0_18, %c0_19] : memref<8x32xf32, #tpu.memory_space<vmem>>, vector<8x8xf32>
    tpu.vector_store %arg9[%c0_18, %c0_19], %39 {strides = array<i32>} : memref<8x32xf32, #tpu.memory_space<vmem>>, vector<8x8xf32>,
    %41 = vector.extract_strided_slice %18 {offsets = [0, 8], sizes = [8, 8], strides = [1, 1]} : vector<8x32xbf16> to vector<8x8xbf16>
    %c0_20 = arith.constant 0 : index
    %c8 = arith.constant 8 : index
    %42 = vector.load %arg8[%c0_20, %c8] : memref<16x64xbf16, #tpu.memory_space<vmem>>, vector<16x8xbf16>
    %c0_21 = arith.constant 0 : index
    %c40 = arith.constant 40 : index
    %43 = vector.load %arg8[%c0_21, %c40] : memref<16x64xbf16, #tpu.memory_space<vmem>>, vector<16x8xbf16>
    %cst_22 = arith.constant dense<0.000000e+00> : vector<8x16xf32>
    %44 = tpu.matmul %41, %42, %cst_22 {dimension_numbers = #tpu.dot_dimension_numbers<[1], [1], [0], [0], [0, 0, 1, 0], [], []>} : vector<8x8xbf16>, vector<16x8xbf16>, vector<8x16xf32> -> vector<8x16xf32>
    %45 = vector.broadcast %20 : vector<1x16xf32> to vector<8x16xf32>
    %46 = arith.addf %44, %45 : vector<8x16xf32>
    %cst_23 = arith.constant dense<0xFF800000> : vector<8xf32>
    %47 = vector.multi_reduction <maximumf>, %46, %cst_23 [1] : vector<8x16xf32> to vector<8xf32>
    %48 = vector.shape_cast %47 : vector<8xf32> to vector<8x1xf32>
    %49 = vector.broadcast %48 : vector<8x1xf32> to vector<8x16xf32>
    %50 = arith.subf %46, %49 : vector<8x16xf32>
    %51 = arith.truncf %50 : vector<8x16xf32> to vector<8x16xbf16>
    %52 = math.exp %51 : vector<8x16xbf16>
    %53 = arith.extf %52 : vector<8x16xbf16> to vector<8x16xf32>
    %cst_24 = arith.constant dense<0.000000e+00> : vector<8xf32>
    %54 = vector.multi_reduction <add>, %53, %cst_24 [1] : vector<8x16xf32> to vector<8xf32>
    %55 = vector.shape_cast %54 : vector<8xf32> to vector<8x1xf32>
    %cst_25 = arith.constant dense<0.000000e+00> : vector<8x8xf32>
    %56 = tpu.matmul %52, %43, %cst_25 {dimension_numbers = #tpu.dot_dimension_numbers<[1], [0], [0], [1], [0, 0, 1, 1], [], []>} : vector<8x16xbf16>, vector<16x8xbf16>, vector<8x8xf32> -> vector<8x8xf32>
    %57 = tpu.reciprocal %55 {approx = true} : vector<8x1xf32> -> vector<8x1xf32>
    %58 = vector.broadcast %57 : vector<8x1xf32> to vector<8x8xf32>
    %59 = arith.mulf %56, %58 : vector<8x8xf32>
    %c0_26 = arith.constant 0 : index
    %c8_27 = arith.constant 8 : index
    %60 = vector.load %arg9[%c0_26, %c8_27] : memref<8x32xf32, #tpu.memory_space<vmem>>, vector<8x8xf32>
    tpu.vector_store %arg9[%c0_26, %c8_27], %59 {strides = array<i32>} : memref<8x32xf32, #tpu.memory_space<vmem>>, vector<8x8xf32>,
    %61 = vector.extract_strided_slice %18 {offsets = [0, 16], sizes = [8, 8], strides = [1, 1]} : vector<8x32xbf16> to vector<8x8xbf16>
    %c0_28 = arith.constant 0 : index
    %c16 = arith.constant 16 : index
    %62 = vector.load %arg8[%c0_28, %c16] : memref<16x64xbf16, #tpu.memory_space<vmem>>, vector<16x8xbf16>
    %c0_29 = arith.constant 0 : index
    %c48 = arith.constant 48 : index
    %63 = vector.load %arg8[%c0_29, %c48] : memref<16x64xbf16, #tpu.memory_space<vmem>>, vector<16x8xbf16>
    %cst_30 = arith.constant dense<0.000000e+00> : vector<8x16xf32>
    %64 = tpu.matmul %61, %62, %cst_30 {dimension_numbers = #tpu.dot_dimension_numbers<[1], [1], [0], [0], [0, 0, 1, 0], [], []>} : vector<8x8xbf16>, vector<16x8xbf16>, vector<8x16xf32> -> vector<8x16xf32>
    %65 = vector.broadcast %20 : vector<1x16xf32> to vector<8x16xf32>
    %66 = arith.addf %64, %65 : vector<8x16xf32>
    %cst_31 = arith.constant dense<0xFF800000> : vector<8xf32>
    %67 = vector.multi_reduction <maximumf>, %66, %cst_31 [1] : vector<8x16xf32> to vector<8xf32>
    %68 = vector.shape_cast %67 : vector<8xf32> to vector<8x1xf32>
    %69 = vector.broadcast %68 : vector<8x1xf32> to vector<8x16xf32>
    %70 = arith.subf %66, %69 : vector<8x16xf32>
    %71 = arith.truncf %70 : vector<8x16xf32> to vector<8x16xbf16>
    %72 = math.exp %71 : vector<8x16xbf16>
    %73 = arith.extf %72 : vector<8x16xbf16> to vector<8x16xf32>
    %cst_32 = arith.constant dense<0.000000e+00> : vector<8xf32>
    %74 = vector.multi_reduction <add>, %73, %cst_32 [1] : vector<8x16xf32> to vector<8xf32>
    %75 = vector.shape_cast %74 : vector<8xf32> to vector<8x1xf32>
    %cst_33 = arith.constant dense<0.000000e+00> : vector<8x8xf32>
    %76 = tpu.matmul %72, %63, %cst_33 {dimension_numbers = #tpu.dot_dimension_numbers<[1], [0], [0], [1], [0, 0, 1, 1], [], []>} : vector<8x16xbf16>, vector<16x8xbf16>, vector<8x8xf32> -> vector<8x8xf32>
    %77 = tpu.reciprocal %75 {approx = true} : vector<8x1xf32> -> vector<8x1xf32>
    %78 = vector.broadcast %77 : vector<8x1xf32> to vector<8x8xf32>
    %79 = arith.mulf %76, %78 : vector<8x8xf32>
    %c0_34 = arith.constant 0 : index
    %c16_35 = arith.constant 16 : index
    %80 = vector.load %arg9[%c0_34, %c16_35] : memref<8x32xf32, #tpu.memory_space<vmem>>, vector<8x8xf32>
    tpu.vector_store %arg9[%c0_34, %c16_35], %79 {strides = array<i32>} : memref<8x32xf32, #tpu.memory_space<vmem>>, vector<8x8xf32>,
    %81 = vector.extract_strided_slice %18 {offsets = [0, 24], sizes = [8, 8], strides = [1, 1]} : vector<8x32xbf16> to vector<8x8xbf16>
    %c0_36 = arith.constant 0 : index
    %c24 = arith.constant 24 : index
    %82 = vector.load %arg8[%c0_36, %c24] : memref<16x64xbf16, #tpu.memory_space<vmem>>, vector<16x8xbf16>
    %c0_37 = arith.constant 0 : index
    %c56 = arith.constant 56 : index
    %83 = vector.load %arg8[%c0_37, %c56] : memref<16x64xbf16, #tpu.memory_space<vmem>>, vector<16x8xbf16>
    %cst_38 = arith.constant dense<0.000000e+00> : vector<8x16xf32>
    %84 = tpu.matmul %81, %82, %cst_38 {dimension_numbers = #tpu.dot_dimension_numbers<[1], [1], [0], [0], [0, 0, 1, 0], [], []>} : vector<8x8xbf16>, vector<16x8xbf16>, vector<8x16xf32> -> vector<8x16xf32>
    %85 = vector.broadcast %20 : vector<1x16xf32> to vector<8x16xf32>
    %86 = arith.addf %84, %85 : vector<8x16xf32>
    %cst_39 = arith.constant dense<0xFF800000> : vector<8xf32>
    %87 = vector.multi_reduction <maximumf>, %86, %cst_39 [1] : vector<8x16xf32> to vector<8xf32>
    %88 = vector.shape_cast %87 : vector<8xf32> to vector<8x1xf32>
    %89 = vector.broadcast %88 : vector<8x1xf32> to vector<8x16xf32>
    %90 = arith.subf %86, %89 : vector<8x16xf32>
    %91 = arith.truncf %90 : vector<8x16xf32> to vector<8x16xbf16>
    %92 = math.exp %91 : vector<8x16xbf16>
    %93 = arith.extf %92 : vector<8x16xbf16> to vector<8x16xf32>
    %cst_40 = arith.constant dense<0.000000e+00> : vector<8xf32>
    %94 = vector.multi_reduction <add>, %93, %cst_40 [1] : vector<8x16xf32> to vector<8xf32>
    %95 = vector.shape_cast %94 : vector<8xf32> to vector<8x1xf32>
    %cst_41 = arith.constant dense<0.000000e+00> : vector<8x8xf32>
    %96 = tpu.matmul %92, %83, %cst_41 {dimension_numbers = #tpu.dot_dimension_numbers<[1], [0], [0], [1], [0, 0, 1, 1], [], []>} : vector<8x16xbf16>, vector<16x8xbf16>, vector<8x8xf32> -> vector<8x8xf32>
    %97 = tpu.reciprocal %95 {approx = true} : vector<8x1xf32> -> vector<8x1xf32>
    %98 = vector.broadcast %97 : vector<8x1xf32> to vector<8x8xf32>
    %99 = arith.mulf %96, %98 : vector<8x8xf32>
    %c0_42 = arith.constant 0 : index
    %c24_43 = arith.constant 24 : index
    %100 = vector.load %arg9[%c0_42, %c24_43] : memref<8x32xf32, #tpu.memory_space<vmem>>, vector<8x8xf32>
    tpu.vector_store %arg9[%c0_42, %c24_43], %99 {strides = array<i32>} : memref<8x32xf32, #tpu.memory_space<vmem>>, vector<8x8xf32>,
    %c0_44 = arith.constant 0 : index
    %c0_45 = arith.constant 0 : index
    %101 = vector.load %arg9[%c0_44, %c0_45] : memref<8x32xf32, #tpu.memory_space<vmem>>, vector<8x32xf32>
    %c0_46 = arith.constant 0 : index
    %c0_47 = arith.constant 0 : index
    %c0_48 = arith.constant 0 : index
    %102 = vector.load %arg7[%c0_46, %c0_47, %c0_48] : memref<1x8x32xf32, #tpu.memory_space<vmem>>, vector<1x8x32xf32>
    %103 = vector.shape_cast %102 : vector<1x8x32xf32> to vector<8x32xf32>
    %104 = vector.shape_cast %101 : vector<8x32xf32> to vector<1x8x32xf32>
    tpu.vector_store %arg7[%c0_46, %c0_47, %c0_48], %104 {strides = array<i32>} : memref<1x8x32xf32, #tpu.memory_space<vmem>>, vector<1x8x32xf32>,
    return
  }
  func.func @transform_0(%arg0: i32, %arg1: i32, %arg2: i32) -> (i32, i32, i32) {
    %c0_i32 = arith.constant 0 : i32
    %c0_i32_0 = arith.constant 0 : i32
    %c0_i32_1 = arith.constant 0 : i32
    return %arg1, %c0_i32, %c0_i32_0 : i32, i32, i32
  }
  func.func @transform_1(%arg0: i32, %arg1: i32, %arg2: i32) -> (i32, i32, i32) {
    %c0_i32 = arith.constant 0 : i32
    %c0_i32_0 = arith.constant 0 : i32
    %c0_i32_1 = arith.constant 0 : i32
    return %arg0, %c0_i32, %c0_i32_0 : i32, i32, i32
  }
  func.func @transform_2(%arg0: i32, %arg1: i32, %arg2: i32) -> (i32, i32, i32) {
    %c0_i32 = arith.constant 0 : i32
    %c0_i32_0 = arith.constant 0 : i32
    %c0_i32_1 = arith.constant 0 : i32
    return %arg0, %c0_i32, %c0_i32_0 : i32, i32, i32
  }
  func.func @transform_3(%arg0: i32, %arg1: i32, %arg2: i32) -> (i32, i32, i32) {
    %c0_i32 = arith.constant 0 : i32
    %c0_i32_0 = arith.constant 0 : i32
    %c0_i32_1 = arith.constant 0 : i32
    return %arg1, %c0_i32, %c0_i32_0 : i32, i32, i32
  }
  func.func @transform_4(%arg0: i32, %arg1: i32, %arg2: i32) -> (i32, i32, i32) {
    %c0_i32 = arith.constant 0 : i32
    return %arg1, %arg2, %arg0 : i32, i32, i32
  }
}

</mosaic_0001>

<llo_original>
// kernel: tpu_custom_call.1
$region0: #{tpu_custom_call.1}
  #allocation0 [shape = 'u32[]', space=smem, size = 0x4, offset = 0x4, fixed_abs, tag = 'smem constant byte address 0x4 - core index']
  #allocation1 [shape = 'u32[144,128]{1,0:T(1,128)}', space=vmem, size = 0x12000, scoped, tag = 'internal scratch']
  #allocation2 [shape = 'bf16[16,64]{1,0:T(16,128)(2,1)}', space=vmem, size = 0x1000, scoped, tag = 'scratch operand']
  #allocation3 [shape = 'f32[8,32]{1,0:T(8,128)}', space=vmem, size = 0x1000, scoped, tag = 'scratch operand']
  %s0 = inlined_call_operand.hbm [shape: f32[2,16,32], index: 0, kind: input, shape index: {}]
  %s1 = inlined_call_operand.hbm [shape: bf16[1,32,96], index: 1, kind: input, shape index: {}]
  %s2 = inlined_call_operand.vmem [shape: f32[1,1,96], index: 2, kind: input, shape index: {}]
  %s3 = inlined_call_operand.vmem [shape: f32[2,1,16], index: 3, kind: input, shape index: {}]
  %s4 = inlined_call_operand.hbm [shape: f32[2,16,32], index: 4, kind: output, shape index: {}]
  %s5 = sld [smem:[#allocation0]]
  $region61: #{tpu_custom_call.1} parent=0
    _
  %s7 = ssub.s32 1, %s5
  %s8 = scalar_select 0, %s7, %s5
  $region1: #{tpu_custom_call.1} parent=0
    #allocation4 [shape = 'u8[16384]{0}', space=vmem, size = 0x4000, scoped, tag = 'input window, operand 0']
    #allocation5 [shape = 's32[2]{0}', space=sflag, size = 0x8, scoped, tag = 'scoped memory for tpu_custom_call.1']
    #allocation6 [shape = 's32[2]{0}', space=sflag, size = 0x8, scoped, tag = 'scoped memory for tpu_custom_call.1']
    #allocation7 [shape = 'u8[8192]{0}', space=vmem, size = 0x2000, scoped, tag = 'input window, operand 1, single buffered']
    #allocation8 [shape = 's32[1]{0}', space=sflag, size = 0x4, scoped, tag = 'scoped memory for tpu_custom_call.1']
    #allocation9 [shape = 'u8[8192]{0}', space=vmem, size = 0x2000, scoped, tag = 'output window, operand 0']
    %9 = vsyncpa [#allocation5], 0
    %s10 = scalar_lea.sflag [#allocation5], 1
    %11 = vsyncpa %s10, 0
    %12 = vsyncpa [#allocation8], 0
    %13 = vsyncpa [#allocation6], 0
    %s14 = scalar_lea.sflag [#allocation6], 1
    %15 = vsyncpa %s14, 0
    loop: start=0, step=1, limit=6
    $region2: #{tpu_custom_call.1} parent=1 // loop_pre_header
      _
    $region3: #{tpu_custom_call.1} parent=1 // loop_header
      %s17 = sphi 0, %s21
      %p18 = scmp.ge.s32.totalorder %s17, 6
      %s24 = sphi 0, %s43
      %s25 = sphi 0, %s39
      %s26 = sphi 0, %s35
      %s27 = sphi 0, %s24
      %s28 = sphi 0, %s25
      %s29 = sphi 0, %s26
      %s30 = sphi 0, %s27
      %s31 = sphi 0, %s28
      %s32 = sphi 0, %s29
      %s46 = sphi 0, %s48
      %s49 = sphi 0, %s46
      %s50 = sphi 0, %s49
      %s66 = sphi 0, %s50
      %s72 = sphi 0, %s74
      %s75 = sphi 0, %s72
      %s76 = sphi 0, %s75
      %s92 = sphi 0, %s76
      %s98 = sphi 0, %s100
      %s101 = sphi 0, %s98
      %s102 = sphi 0, %s101
      %s118 = sphi 0, %s102
      %s124 = sphi 0, %s126
      %s127 = sphi 0, %s124
      %s128 = sphi 0, %s127
      %s144 = sphi 0, %s128
      %s154 = sphi 0, %s156
      %s157 = sphi 0, %s154
      %s158 = sphi 0, %s157
      %s174 = sphi 0, %s158
    $region4: #{tpu_custom_call.1} parent=1 // loop_header_branch
      %20 = sbr.rel (%p18) target = $region8
    $region5: #{tpu_custom_call.1} parent=1 // loop_body
      %s22 = ssub.s32 %s17, 1
      %s23 = ssub.s32 %s17, 2
      %s33 = sadd.s32 1, %s26
      %p34 = scmp.ge.s32.totalorder %s33, 2
      %s35 = scalar_select %p34, 0, %s33
      %s36 = sadd.s32 1, %s25
      %s37 = scalar_select %p34, %s36, %s25
      %p38 = scmp.ge.s32.totalorder %s37, 2
      %s39 = scalar_select %p38, 0, %s37
      %s40 = sadd.s32 1, %s24
      %s41 = scalar_select %p38, %s40, %s24
      %p42 = scmp.ge.s32.totalorder %s41, 1
      %s43 = scalar_select %p42, 0, %s41
      %s44 = ssub.s32 %s25, %s39
      %p45 = scmp.eq.s32.totalorder %s44, 0
      %s47 = sadd.s32 %s46, 1
      %s48 = scalar_select %p45, %s46, %s47
      %p51 = pneg %p45
      %p52 = scmp.eq.s32.totalorder %s17, 3
      %p53 = por %p51, %p52
      %p54 = scmp.ne.s32.totalorder %s46, %s49
      %p55 = scmp.eq.s32.totalorder %s17, 0
      %p56 = por %p54, %p55
      %p57 = scmp.ne.s32.totalorder %s46, %s49
      %p58 = scmp.eq.s32.totalorder %s22, 3
      %p59 = por %p57, %p58
      %p60 = scmp.ne.s32.totalorder %s49, %s50
      %p61 = scmp.eq.s32.totalorder %s22, 0
      %p62 = por %p60, %p61
      %p63 = scmp.ne.s32.totalorder %s49, %s50
      %p64 = scmp.eq.s32.totalorder %s23, 3
      %p65 = por %p63, %p64
      %p67 = scmp.ne.s32.totalorder %s50, %s66
      %p68 = scmp.eq.s32.totalorder %s23, 0
      %p69 = por %p67, %p68
      %s70 = ssub.s32 %s24, %s43
      %p71 = scmp.eq.s32.totalorder %s70, 0
      %s73 = sadd.s32 %s72, 1
      %s74 = scalar_select %p71, %s72, %s73
      %p77 = pneg %p71
      %p78 = scmp.eq.s32.totalorder %s17, 3
      %p79 = por %p77, %p78
      %p80 = scmp.ne.s32.totalorder %s72, %s75
      %p81 = scmp.eq.s32.totalorder %s17, 0
      %p82 = por %p80, %p81
      %p83 = scmp.ne.s32.totalorder %s72, %s75
      %p84 = scmp.eq.s32.totalorder %s22, 3
      %p85 = por %p83, %p84
      %p86 = scmp.ne.s32.totalorder %s75, %s76
      %p87 = scmp.eq.s32.totalorder %s22, 0
      %p88 = por %p86, %p87
      %p89 = scmp.ne.s32.totalorder %s75, %s76
      %p90 = scmp.eq.s32.totalorder %s23, 3
      %p91 = por %p89, %p90
      %p93 = scmp.ne.s32.totalorder %s76, %s92
      %p94 = scmp.eq.s32.totalorder %s23, 0
      %p95 = por %p93, %p94
      %s96 = ssub.s32 %s24, %s43
      %p97 = scmp.eq.s32.totalorder %s96, 0
      %s99 = sadd.s32 %s98, 1
      %s100 = scalar_select %p97, %s98, %s99
      %p103 = pneg %p97
      %p104 = scmp.eq.s32.totalorder %s17, 3
      %p105 = por %p103, %p104
      %p106 = scmp.ne.s32.totalorder %s98, %s101
      %p107 = scmp.eq.s32.totalorder %s17, 0
      %p108 = por %p106, %p107
      %p109 = scmp.ne.s32.totalorder %s98, %s101
      %p110 = scmp.eq.s32.totalorder %s22, 3
      %p111 = por %p109, %p110
      %p112 = scmp.ne.s32.totalorder %s101, %s102
      %p113 = scmp.eq.s32.totalorder %s22, 0
      %p114 = por %p112, %p113
      %p115 = scmp.ne.s32.totalorder %s101, %s102
      %p116 = scmp.eq.s32.totalorder %s23, 3
      %p117 = por %p115, %p116
      %p119 = scmp.ne.s32.totalorder %s102, %s118
      %p120 = scmp.eq.s32.totalorder %s23, 0
      %p121 = por %p119, %p120
      %s122 = ssub.s32 %s25, %s39
      %p123 = scmp.eq.s32.totalorder %s122, 0
      %s125 = sadd.s32 %s124, 1
      %s126 = scalar_select %p123, %s124, %s125
      %p129 = pneg %p123
      %p130 = scmp.eq.s32.totalorder %s17, 3
      %p131 = por %p129, %p130
      %p132 = scmp.ne.s32.totalorder %s124, %s127
      %p133 = scmp.eq.s32.totalorder %s17, 0
      %p134 = por %p132, %p133
      %p135 = scmp.ne.s32.totalorder %s124, %s127
      %p136 = scmp.eq.s32.totalorder %s22, 3
      %p137 = por %p135, %p136
      %p138 = scmp.ne.s32.totalorder %s127, %s128
      %p139 = scmp.eq.s32.totalorder %s22, 0
      %p140 = por %p138, %p139
      %p141 = scmp.ne.s32.totalorder %s127, %s128
      %p142 = scmp.eq.s32.totalorder %s23, 3
      %p143 = por %p141, %p142
      %p145 = scmp.ne.s32.totalorder %s128, %s144
      %p146 = scmp.eq.s32.totalorder %s23, 0
      %p147 = por %p145, %p146
      %s148 = ssub.s32 %s25, %s39
      %s149 = ssub.s32 %s26, %s35
      %s150 = sor.u32 %s148, %s149
      %s151 = ssub.s32 %s24, %s43
      %s152 = sor.u32 %s150, %s151
      %p153 = scmp.eq.s32.totalorder %s152, 0
      %s155 = sadd.s32 %s154, 1
      %s156 = scalar_select %p153, %s154, %s155
      %p159 = pneg %p153
      %p160 = scmp.eq.s32.totalorder %s17, 3
      %p161 = por %p159, %p160
      %p162 = scmp.ne.s32.totalorder %s154, %s157
      %p163 = scmp.eq.s32.totalorder %s17, 0
      %p164 = por %p162, %p163
      %p165 = scmp.ne.s32.totalorder %s154, %s157
      %p166 = scmp.eq.s32.totalorder %s22, 3
      %p167 = por %p165, %p166
      %p168 = scmp.ne.s32.totalorder %s157, %s158
      %p169 = scmp.eq.s32.totalorder %s22, 0
      %p170 = por %p168, %p169
      %p171 = scmp.ne.s32.totalorder %s157, %s158
      %p172 = scmp.eq.s32.totalorder %s23, 3
      %p173 = por %p171, %p172
      %p175 = scmp.ne.s32.totalorder %s158, %s174
      %p176 = scmp.eq.s32.totalorder %s23, 0
      %p177 = por %p175, %p176
      %p178 = scmp.le.s32.totalorder 1, %s17
      %p179 = scmp.lt.s32.totalorder %s17, 5
      %p180 = pnand %p178, %p179
      %p181 = pneg %p180
      // Predicated region
      $region9: #{tpu_custom_call.1} parent=5 // pred_check
        _
      $region10: #{tpu_custom_call.1} parent=5 // pred_check_branch
        %183 = sbr.rel (%p180) target = $region12
      $region11: #{tpu_custom_call.1} parent=5 // pred_region
        %s184 = ssub.s32 %s17, 1
        // Predicated region
        $region13: #{tpu_custom_call.1} parent=11 // pred_check
          %p185 = pneg %p88
        $region14: #{tpu_custom_call.1} parent=11 // pred_check_branch
          %187 = sbr.rel (%p185) target = $region16
        $region15: #{tpu_custom_call.1} parent=11 // pred_region
          %s189 = ssub.s32 256, 256
          %190 = vsyncadd [#allocation8], %s189
          %s191 = smul.addr %s27, 4
          %s192 = smul.addr %s191, 64
          %s193 = scalar_lea.hbm %s1, %s192
          %s194 = sshll.u32 [#allocation7], 4
          %s195 = int_to_ptr.vmem [resolvable:$true] %s194
          %200 = dma.hbm_to_vmem [thread:$0]  %s193, 256, %s195, [#allocation8], 64, 64, 4
        $region16: #{tpu_custom_call.1} parent=11 // pred_fallthru
          _
        // Predicated region
        $region17: #{tpu_custom_call.1} parent=11 // pred_check
          %p201 = pneg %p114
        $region18: #{tpu_custom_call.1} parent=11 // pred_check_branch
          %203 = sbr.rel (%p201) target = $region20
        $region19: #{tpu_custom_call.1} parent=11 // pred_region
          %p204 = scmp.lt.s32.totalorder %s27, 0
          %s205 = scalar_select %p204, %s27, 0
          %s206 = scalar_lea.vmem %s2, %s205
        $region20: #{tpu_custom_call.1} parent=11 // pred_fallthru
          _
      $region12: #{tpu_custom_call.1} parent=5 // pred_fallthru
        _
      %p207 = scmp.lt.s32.totalorder %s17, 4
      // Predicated region
      $region21: #{tpu_custom_call.1} parent=5 // pred_check
        %p208 = pneg %p207
      $region22: #{tpu_custom_call.1} parent=5 // pred_check_branch
        %210 = sbr.rel (%p208) target = $region24
      $region23: #{tpu_custom_call.1} parent=5 // pred_region
        // Predicated region
        $region25: #{tpu_custom_call.1} parent=23 // pred_check
          %p211 = pneg %p56
        $region26: #{tpu_custom_call.1} parent=23 // pred_check_branch
          %213 = sbr.rel (%p211) target = $region28
        $region27: #{tpu_custom_call.1} parent=23 // pred_region
          %s214 = sand.u32 %s46, 1
          %s215 = scalar_lea.sflag [#allocation5], %s214
          %s216 = sand.u32 %s46, 1
          %s217 = smul.addr %s216, 16
          %s218 = scalar_lea.vmem [#allocation4], %s217
          %s220 = ssub.s32 256, 256
          %221 = vsyncadd %s215, %s220
          %s222 = smul.addr %s25, 2
          %s223 = smul.addr %s222, 128
          %s224 = scalar_lea.hbm %s0, %s223
          %s225 = sshll.u32 %s218, 4
          %s226 = int_to_ptr.vmem [resolvable:$true] %s225
          %231 = dma.hbm_to_vmem [thread:$0]  %s224, 256, %s226, %s215, 128, 128, 8
        $region28: #{tpu_custom_call.1} parent=23 // pred_fallthru
          _
        // Predicated region
        $region29: #{tpu_custom_call.1} parent=23 // pred_check
          %p232 = pneg %p134
        $region30: #{tpu_custom_call.1} parent=23 // pred_check_branch
          %234 = sbr.rel (%p232) target = $region32
        $region31: #{tpu_custom_call.1} parent=23 // pred_region
          %p235 = scmp.lt.s32.totalorder %s25, 1
          %s236 = scalar_select %p235, %s25, 1
          %s237 = scalar_lea.vmem %s3, %s236
        $region32: #{tpu_custom_call.1} parent=23 // pred_fallthru
          _
      $region24: #{tpu_custom_call.1} parent=5 // pred_fallthru
        _
      %p238 = scmp.le.s32.totalorder 1, %s17
      %p239 = scmp.lt.s32.totalorder %s17, 5
      %p240 = pnand %p238, %p239
      %p241 = pneg %p240
      // Predicated region
      $region33: #{tpu_custom_call.1} parent=5 // pred_check
        _
      $region34: #{tpu_custom_call.1} parent=5 // pred_check_branch
        %243 = sbr.rel (%p240) target = $region36
      $region35: #{tpu_custom_call.1} parent=5 // pred_region
        %s244 = ssub.s32 %s17, 1
        %s245 = sand.u32 %s49, 1
        %s246 = scalar_lea.sflag [#allocation5], %s245
        %s247 = sand.u32 %s49, 1
        %s248 = smul.addr %s247, 16
        %s249 = scalar_lea.vmem [#allocation4], %s248
        // Predicated region
        $region37: #{tpu_custom_call.1} parent=35 // pred_check
          %p250 = pneg %p62
        $region38: #{tpu_custom_call.1} parent=35 // pred_check_branch
          %252 = sbr.rel (%p250) target = $region40
        $region39: #{tpu_custom_call.1} parent=35 // pred_region
          %253 = dma.done %s246, 256
        $region40: #{tpu_custom_call.1} parent=35 // pred_fallthru
          _
        // Predicated region
        $region41: #{tpu_custom_call.1} parent=35 // pred_check
          %p254 = pneg %p88
        $region42: #{tpu_custom_call.1} parent=35 // pred_check_branch
          %256 = sbr.rel (%p254) target = $region44
        $region43: #{tpu_custom_call.1} parent=35 // pred_region
          %257 = dma.done [#allocation8], 256
        $region44: #{tpu_custom_call.1} parent=35 // pred_fallthru
          _
        %s258 = sand.u32 %s49, 1
        %s259 = scalar_lea.sflag [#allocation5], %s258
        %s260 = sand.u32 %s49, 1
        %s261 = smul.addr %s260, 16
        %s262 = scalar_lea.vmem [#allocation4], %s261
        %p263 = pneg %p62
        %p264 = pneg %p59
        %p265 = pneg %p88
        %p266 = pneg %p85
        %p267 = scmp.lt.s32.totalorder %s27, 0
        %s268 = scalar_select %p267, %s27, 0
        %s269 = scalar_lea.vmem %s2, %s268
        %p270 = pneg %p114
        %p271 = pneg %p111
        %p272 = scmp.lt.s32.totalorder %s28, 1
        %s273 = scalar_select %p272, %s28, 1
        %s274 = scalar_lea.vmem %s3, %s273
        %p275 = pneg %p140
        %p276 = pneg %p137
        %p277 = pneg %p170
        %p278 = pneg %p167
        %s279 = sand.u32 %s157, 1
        %s280 = scalar_lea.sflag [#allocation6], %s279
        %s281 = sand.u32 %s157, 1
        %s282 = smul.addr %s281, 8
        %s283 = scalar_lea.vmem [#allocation9], %s282
        %p284 = scmp.lt.s32.totalorder %s27, 0
        %s285 = scalar_select %p284, %s27, 0
        %s286 = scalar_lea.vmem %s2, %s285
        %p287 = scmp.lt.s32.totalorder %s28, 1
        %s288 = scalar_select %p287, %s28, 1
        %s289 = scalar_lea.vmem %s3, %s288
        %v291 = vld [vmem:[#allocation7] sm:$0xf]
        %v292 = vld [vmem:[#allocation7 + $0x4] sm:$0xf]
        %v293 = vld [vmem:[#allocation7 + $0x8] sm:$0xf]
        %v294 = vld [vmem:[#allocation7 + $0xc] sm:$0xf]
        %v295 = vld [vmem:[%s286] sm:$0x1]
        %p296 = scmp.eq.s32.totalorder %s29, 0
        // Predicated region
        $region45: #{tpu_custom_call.1} parent=35 // pred_check
          %p297 = pneg %p296
        $region46: #{tpu_custom_call.1} parent=35 // pred_check_branch
          %299 = sbr.rel (%p297) target = $region48
        $region47: #{tpu_custom_call.1} parent=35 // pred_region
          %v300 = vld [vmem:[%s249] sm:$0xff]
          %v301 = vld [vmem:[%s249 + $0x8] sm:$0xff]
          %v302 = vpack.c.bf16 %v301, %v300
          %v304 = vlaneseq
          %v305 = vshrl.u32 %v304, 7
          %v306 = vsub.s32 0, %v305
          %v307 = vrot.slane %v295, %v306
          %v312 = vunpack.c.l.b16 %v291
          %v313 = vunpack.c.l.b16 %v292
          %v314 = vunpack.c.l.b16 %v293
          %v315 = vunpack.c.l.b16 %v294
          %v316 = vpack.c.b16 %v313, %v312
          %v317 = vpack.c.b16 %v315, %v314
          %318 = vrot.lane.b32.xlu0 %v316, 96
          %v319 = vpop.permute.xlu0 %318
          %320 = vrot.lane.b32.xlu0 %v317, 96
          %v321 = vpop.permute.xlu0 %320
          %324 = vrot.lane.b32.xlu0 %v307, 96
          %v325 = vpop.permute.xlu0 %324
          %vm327 = vcmask 261120
          %v329 = vsel %vm327, %v302, 0
          %331 = vmatprep.subr.bf16.mxu0 0
          %332 = vmatpush1.bf16.msra.mxu0 %v319
          %333 = vmatprep.subr.bf16.mxu0 0
          %334 = vmatpush1.bf16.msra.mxu0 %v321
          %335 = vmatprep.subr.bf16.mxu0 0
          %336 = vmatpush1.bf16.msra.mxu0 0
          %337 = vmatprep.subr.bf16.mxu0 0
          %338 = vmatpush1.bf16.msra.mxu0 0
          %339 = vmatprep.subr.bf16.mxu0 0
          %340 = vmatpush1.bf16.msra.mxu0 0
          %341 = vmatprep.subr.bf16.mxu0 0
          %342 = vmatpush1.bf16.msra.mxu0 0
          %343 = vmatprep.subr.bf16.mxu0 0
          %344 = vmatpush1.bf16.msra.mxu0 0
          %345 = vmatprep.subr.bf16.mxu0 0
          %346 = vmatpush1.bf16.msra.mxu0 0
          %347 = vmatprep.subr.bf16.mxu0 0
          %348 = vmatpush1.bf16.msra.mxu0 0
          %349 = vmatprep.subr.bf16.mxu0 0
          %350 = vmatpush1.bf16.msra.mxu0 0
          %351 = vmatprep.subr.bf16.mxu0 0
          %352 = vmatpush1.bf16.msra.mxu0 0
          %353 = vmatprep.subr.bf16.mxu0 0
          %354 = vmatpush1.bf16.msra.mxu0 0
          %355 = vmatprep.subr.bf16.mxu0 0
          %356 = vmatpush1.bf16.msra.mxu0 0
          %357 = vmatprep.subr.bf16.mxu0 0
          %358 = vmatpush1.bf16.msra.mxu0 0
          %359 = vmatprep.subr.bf16.mxu0 0
          %360 = vmatpush1.bf16.msra.mxu0 0
          %361 = vmatprep.subr.bf16.mxu0 0
          %362 = vmatpush1.bf16.msra.mxu0 0
          %363 = vmatprep.mubr.bf16.mxu0 0
          %364 = vmatmul.mubr.bf16.gmra.mrb[0].mxu0 %v329
          %v365 = vpop.f32.mrb[0].mxu0
          %v366 = vadd.f32 %v325, %v365
          %v367 = vpop.f32.mrb[0].mxu0
          %v368 = vpop.f32.mrb[0].mxu0
          %v369 = vadd.f32 %v325, %v368
          %v370 = vpop.f32.mrb[0].mxu0
          %371 = vdwg.mxu0
          %v372 = vpack.c.bf16 %v369, %v366
          %vm373 = vcmask 523264
          %374 = vst.msk [vmem:[#allocation2] sm:$0xff] %vm373, %v372
        $region48: #{tpu_custom_call.1} parent=35 // pred_fallthru
          _
        %s375 = smul.u32 %s29, 8
        %s376 = scalar_lea.vmem %s249, %s375 [#allocation4]
        %v377 = vld [vmem:[%s376] sm:$0xff]
        %v378 = vpack.c.bf16 %v377, %v377
        %v380 = vlaneseq
        %v381 = vshrl.u32 %v380, 7
        %v382 = vsub.s32 0, %v381
        %v383 = vrot.slane %v295, %v382
        %v389 = vunpack.c.l.b16 %v291
        %v390 = vunpack.c.l.b16 %v292
        %v391 = vunpack.c.l.b16 %v293
        %v392 = vunpack.c.l.b16 %v294
        %v393 = vpack.c.b16 %v390, %v389
        %v394 = vpack.c.b16 %v392, %v391
        %vm397 = vcmask 261120
        %v399 = vsel %vm397, %v378, 0
        %401 = vmatprep.subr.bf16.mxu0 0
        %402 = vmatpush1.bf16.msra.mxu0 %v393
        %403 = vmatprep.subr.bf16.mxu0 0
        %404 = vmatpush1.bf16.msra.mxu0 %v394
        %405 = vmatprep.subr.bf16.mxu0 0
        %406 = vmatpush1.bf16.msra.mxu0 0
        %407 = vmatprep.subr.bf16.mxu0 0
        %408 = vmatpush1.bf16.msra.mxu0 0
        %409 = vmatprep.subr.bf16.mxu0 0
        %410 = vmatpush1.bf16.msra.mxu0 0
        %411 = vmatprep.subr.bf16.mxu0 0
        %412 = vmatpush1.bf16.msra.mxu0 0
        %413 = vmatprep.subr.bf16.mxu0 0
        %414 = vmatpush1.bf16.msra.mxu0 0
        %415 = vmatprep.subr.bf16.mxu0 0
        %416 = vmatpush1.bf16.msra.mxu0 0
        %417 = vmatprep.subr.bf16.mxu0 0
        %418 = vmatpush1.bf16.msra.mxu0 0
        %419 = vmatprep.subr.bf16.mxu0 0
        %420 = vmatpush1.bf16.msra.mxu0 0
        %421 = vmatprep.subr.bf16.mxu0 0
        %422 = vmatpush1.bf16.msra.mxu0 0
        %423 = vmatprep.subr.bf16.mxu0 0
        %424 = vmatpush1.bf16.msra.mxu0 0
        %425 = vmatprep.subr.bf16.mxu0 0
        %426 = vmatpush1.bf16.msra.mxu0 0
        %427 = vmatprep.subr.bf16.mxu0 0
        %428 = vmatpush1.bf16.msra.mxu0 0
        %429 = vmatprep.subr.bf16.mxu0 0
        %430 = vmatpush1.bf16.msra.mxu0 0
        %431 = vmatprep.subr.bf16.mxu0 0
        %432 = vmatpush1.bf16.msra.mxu0 0
        %433 = vmatprep.mubr.bf16.mxu0 0
        %434 = vmatmul.mubr.bf16.gmra.mrb[0].mxu0 %v399
        %v435 = vpop.f32.mrb[0].mxu0
        %v436 = vadd.f32 %v383, %v435
        %v437 = vpop.f32.mrb[0].mxu0
        %v438 = vpop.f32.mrb[0].mxu0
        %v439 = vpop.f32.mrb[0].mxu0
        %440 = vdwg.mxu0
        %v441 = vpack.c.bf16 %v436, %v436
        %v442 = vld [vmem:[%s289] sm:$0x1]
        %v443 = vld [vmem:[#allocation2] sm:$0xff]
        %v445 = vlaneseq
        %v446 = vshrl.u32 %v445, 7
        %v447 = vsub.s32 0, %v446
        %v448 = vrot.slane %v442, %v447
        %vm450 = vcmask 64512
        %v452 = vsel %vm450, %v441, 0
        %v455 = vsel %vm450, %v443, 0
        %457 = vmatprep.subr.bf16.mxu0 0
        %458 = vmatpush1.bf16.xpose.msra.mxu0 %v455
        %459 = vmatprep.subr.bf16.mxu0 0
        %460 = vmatpush1.bf16.xpose.msra.mxu0 0
        %461 = vmatprep.subr.bf16.mxu0 0
        %462 = vmatpush1.bf16.xpose.msra.mxu0 0
        %463 = vmatprep.subr.bf16.mxu0 0
        %464 = vmatpush1.bf16.xpose.msra.mxu0 0
        %465 = vmatprep.subr.bf16.mxu0 0
        %466 = vmatpush1.bf16.xpose.msra.mxu0 0
        %467 = vmatprep.subr.bf16.mxu0 0
        %468 = vmatpush1.bf16.xpose.msra.mxu0 0
        %469 = vmatprep.subr.bf16.mxu0 0
        %470 = vmatpush1.bf16.xpose.msra.mxu0 0
        %471 = vmatprep.subr.bf16.mxu0 0
        %472 = vmatpush1.bf16.xpose.msra.mxu0 0
        %473 = vmatprep.subr.bf16.mxu0 0
        %474 = vmatpush1.bf16.xpose.msra.mxu0 0
        %475 = vmatprep.subr.bf16.mxu0 0
        %476 = vmatpush1.bf16.xpose.msra.mxu0 0
        %477 = vmatprep.subr.bf16.mxu0 0
        %478 = vmatpush1.bf16.xpose.msra.mxu0 0
        %479 = vmatprep.subr.bf16.mxu0 0
        %480 = vmatpush1.bf16.xpose.msra.mxu0 0
        %481 = vmatprep.subr.bf16.mxu0 0
        %482 = vmatpush1.bf16.xpose.msra.mxu0 0
        %483 = vmatprep.subr.bf16.mxu0 0
        %484 = vmatpush1.bf16.xpose.msra.mxu0 0
        %485 = vmatprep.subr.bf16.mxu0 0
        %486 = vmatpush1.bf16.xpose.msra.mxu0 0
        %487 = vmatprep.subr.bf16.mxu0 0
        %488 = vmatpush1.bf16.xpose.msra.mxu0 0
        %489 = vmatprep.mubr.bf16.mxu0 0
        %490 = vmatmul.mubr.bf16.gmra.mrb[0].mxu0 %v452
        %v491 = vpop.f32.mrb[0].mxu0
        %v492 = vadd.f32 %v448, %v491
        %v493 = vpop.f32.mrb[0].mxu0
        %v494 = vpop.f32.mrb[0].mxu0
        %v495 = vpop.f32.mrb[0].mxu0
        %496 = vdwg.mxu0
        %vm497 = vcmask 130048
        %v498 = vsel %vm497, %v492, -inf
        %499 = vmax.xlane.f32.xlu0 %v498
        %v500 = vpop.xlane.xlu0 %499
        %v501 = vsub.f32 %v492, %v500
        %v502 = vpack.c.bf16 %v501, %v501
        %v504 = vmul.bf16 %v502, 1069105081
        %v505 = vpow.bf16.pop %v504
        %v506 = vunpack.c.l.bf16 %v505
        %v507 = vsel %vm497, %v506, 0.0
        %508 = vadd.xlane.f32.xlu0 %v507
        %v509 = vpop.xlane.xlu0 %508
        %511 = vrot.lane.b32.xlu0 %v443, 96
        %v512 = vpop.permute.xlu0 %511
        %v515 = vsel %vm497, %v505, 0
        %517 = vmatprep.subr.bf16.mxu0 0
        %518 = vmatpush1.bf16.msra.mxu0 %v512
        %519 = vmatprep.subr.bf16.mxu0 0
        %520 = vmatpush1.bf16.msra.mxu0 0
        %521 = vmatprep.subr.bf16.mxu0 0
        %522 = vmatpush1.bf16.msra.mxu0 0
        %523 = vmatprep.subr.bf16.mxu0 0
        %524 = vmatpush1.bf16.msra.mxu0 0
        %525 = vmatprep.subr.bf16.mxu0 0
        %526 = vmatpush1.bf16.msra.mxu0 0
        %527 = vmatprep.subr.bf16.mxu0 0
        %528 = vmatpush1.bf16.msra.mxu0 0
        %529 = vmatprep.subr.bf16.mxu0 0
        %530 = vmatpush1.bf16.msra.mxu0 0
        %531 = vmatprep.subr.bf16.mxu0 0
        %532 = vmatpush1.bf16.msra.mxu0 0
        %533 = vmatprep.subr.bf16.mxu0 0
        %534 = vmatpush1.bf16.msra.mxu0 0
        %535 = vmatprep.subr.bf16.mxu0 0
        %536 = vmatpush1.bf16.msra.mxu0 0
        %537 = vmatprep.subr.bf16.mxu0 0
        %538 = vmatpush1.bf16.msra.mxu0 0
        %539 = vmatprep.subr.bf16.mxu0 0
        %540 = vmatpush1.bf16.msra.mxu0 0
        %541 = vmatprep.subr.bf16.mxu0 0
        %542 = vmatpush1.bf16.msra.mxu0 0
        %543 = vmatprep.subr.bf16.mxu0 0
        %544 = vmatpush1.bf16.msra.mxu0 0
        %545 = vmatprep.subr.bf16.mxu0 0
        %546 = vmatpush1.bf16.msra.mxu0 0
        %547 = vmatprep.subr.bf16.mxu0 0
        %548 = vmatpush1.bf16.msra.mxu0 0
        %549 = vmatprep.mubr.bf16.mxu0 0
        %550 = vmatmul.mubr.bf16.gmra.mrb[0].mxu0 %v515
        %v551 = vpop.f32.mrb[0].mxu0
        %v552 = vadd.f32 0.0, %v551
        %v553 = vpop.f32.mrb[0].mxu0
        %v554 = vpop.f32.mrb[0].mxu0
        %v555 = vpop.f32.mrb[0].mxu0
        %556 = vdwg.mxu0
        %v557 = vrcp.pop %v509
        %v558 = vmul.f32 %v552, %v557
        %559 = vst.msk [vmem:[#allocation3] sm:$0xff] %vm450, %v558
        %v560 = vld [vmem:[#allocation2] sm:$0xff]
        %562 = vrot.lane.b32.xlu0 %v441, 120
        %v563 = vpop.permute.xlu0 %562
        %565 = vrot.lane.b32.xlu0 %v560, 120
        %v566 = vpop.permute.xlu0 %565
        %v568 = vsel %vm450, %v563, 0
        %v571 = vsel %vm450, %v566, 0
        %573 = vmatprep.subr.bf16.mxu0 0
        %574 = vmatpush1.bf16.xpose.msra.mxu0 %v571
        %575 = vmatprep.subr.bf16.mxu0 0
        %576 = vmatpush1.bf16.xpose.msra.mxu0 0
        %577 = vmatprep.subr.bf16.mxu0 0
        %578 = vmatpush1.bf16.xpose.msra.mxu0 0
        %579 = vmatprep.subr.bf16.mxu0 0
        %580 = vmatpush1.bf16.xpose.msra.mxu0 0
        %581 = vmatprep.subr.bf16.mxu0 0
        %582 = vmatpush1.bf16.xpose.msra.mxu0 0
        %583 = vmatprep.subr.bf16.mxu0 0
        %584 = vmatpush1.bf16.xpose.msra.mxu0 0
        %585 = vmatprep.subr.bf16.mxu0 0
        %586 = vmatpush1.bf16.xpose.msra.mxu0 0
        %587 = vmatprep.subr.bf16.mxu0 0
        %588 = vmatpush1.bf16.xpose.msra.mxu0 0
        %589 = vmatprep.subr.bf16.mxu0 0
        %590 = vmatpush1.bf16.xpose.msra.mxu0 0
        %591 = vmatprep.subr.bf16.mxu0 0
        %592 = vmatpush1.bf16.xpose.msra.mxu0 0
        %593 = vmatprep.subr.bf16.mxu0 0
        %594 = vmatpush1.bf16.xpose.msra.mxu0 0
        %595 = vmatprep.subr.bf16.mxu0 0
        %596 = vmatpush1.bf16.xpose.msra.mxu0 0
        %597 = vmatprep.subr.bf16.mxu0 0
        %598 = vmatpush1.bf16.xpose.msra.mxu0 0
        %599 = vmatprep.subr.bf16.mxu0 0
        %600 = vmatpush1.bf16.xpose.msra.mxu0 0
        %601 = vmatprep.subr.bf16.mxu0 0
        %602 = vmatpush1.bf16.xpose.msra.mxu0 0
        %603 = vmatprep.subr.bf16.mxu0 0
        %604 = vmatpush1.bf16.xpose.msra.mxu0 0
        %605 = vmatprep.mubr.bf16.mxu0 0
        %606 = vmatmul.mubr.bf16.gmra.mrb[0].mxu0 %v568
        %v607 = vpop.f32.mrb[0].mxu0
        %v608 = vadd.f32 %v448, %v607
        %v609 = vpop.f32.mrb[0].mxu0
        %v610 = vpop.f32.mrb[0].mxu0
        %v611 = vpop.f32.mrb[0].mxu0
        %612 = vdwg.mxu0
        %v613 = vsel %vm497, %v608, -inf
        %614 = vmax.xlane.f32.xlu0 %v613
        %v615 = vpop.xlane.xlu0 %614
        %v616 = vsub.f32 %v608, %v615
        %v617 = vpack.c.bf16 %v616, %v616
        %v619 = vmul.bf16 %v617, 1069105081
        %v620 = vpow.bf16.pop %v619
        %v621 = vunpack.c.l.bf16 %v620
        %v622 = vsel %vm497, %v621, 0.0
        %623 = vadd.xlane.f32.xlu0 %v622
        %v624 = vpop.xlane.xlu0 %623
        %625 = vrot.lane.b32.xlu0 %v560, 88
        %v626 = vpop.permute.xlu0 %625
        %v629 = vsel %vm497, %v620, 0
        %631 = vmatprep.subr.bf16.mxu0 0
        %632 = vmatpush1.bf16.msra.mxu0 %v626
        %633 = vmatprep.subr.bf16.mxu0 0
        %634 = vmatpush1.bf16.msra.mxu0 0
        %635 = vmatprep.subr.bf16.mxu0 0
        %636 = vmatpush1.bf16.msra.mxu0 0
        %637 = vmatprep.subr.bf16.mxu0 0
        %638 = vmatpush1.bf16.msra.mxu0 0
        %639 = vmatprep.subr.bf16.mxu0 0
        %640 = vmatpush1.bf16.msra.mxu0 0
        %641 = vmatprep.subr.bf16.mxu0 0
        %642 = vmatpush1.bf16.msra.mxu0 0
        %643 = vmatprep.subr.bf16.mxu0 0
        %644 = vmatpush1.bf16.msra.mxu0 0
        %645 = vmatprep.subr.bf16.mxu0 0
        %646 = vmatpush1.bf16.msra.mxu0 0
        %647 = vmatprep.subr.bf16.mxu0 0
        %648 = vmatpush1.bf16.msra.mxu0 0
        %649 = vmatprep.subr.bf16.mxu0 0
        %650 = vmatpush1.bf16.msra.mxu0 0
        %651 = vmatprep.subr.bf16.mxu0 0
        %652 = vmatpush1.bf16.msra.mxu0 0
        %653 = vmatprep.subr.bf16.mxu0 0
        %654 = vmatpush1.bf16.msra.mxu0 0
        %655 = vmatprep.subr.bf16.mxu0 0
        %656 = vmatpush1.bf16.msra.mxu0 0
        %657 = vmatprep.subr.bf16.mxu0 0
        %658 = vmatpush1.bf16.msra.mxu0 0
        %659 = vmatprep.subr.bf16.mxu0 0
        %660 = vmatpush1.bf16.msra.mxu0 0
        %661 = vmatprep.subr.bf16.mxu0 0
        %662 = vmatpush1.bf16.msra.mxu0 0
        %663 = vmatprep.mubr.bf16.mxu0 0
        %664 = vmatmul.mubr.bf16.gmra.mrb[0].mxu0 %v629
        %v665 = vpop.f32.mrb[0].mxu0
        %v666 = vadd.f32 0.0, %v665
        %v667 = vpop.f32.mrb[0].mxu0
        %v668 = vpop.f32.mrb[0].mxu0
        %v669 = vpop.f32.mrb[0].mxu0
        %670 = vdwg.mxu0
        %v671 = vrcp.pop %v624
        %v672 = vmul.f32 %v666, %v671
        %674 = vrot.lane.b32.xlu0 %v672, 8
        %v675 = vpop.permute.xlu0 %674
        %vm677 = vcmask 130112
        %678 = vst.msk [vmem:[#allocation3] sm:$0xff] %vm677, %v675
        %v679 = vld [vmem:[#allocation2] sm:$0xff]
        %680 = vrot.lane.b32.xlu0 %v441, 112
        %v681 = vpop.permute.xlu0 %680
        %683 = vrot.lane.b32.xlu0 %v679, 112
        %v684 = vpop.permute.xlu0 %683
        %v686 = vsel %vm450, %v681, 0
        %v689 = vsel %vm450, %v684, 0
        %691 = vmatprep.subr.bf16.mxu0 0
        %692 = vmatpush1.bf16.xpose.msra.mxu0 %v689
        %693 = vmatprep.subr.bf16.mxu0 0
        %694 = vmatpush1.bf16.xpose.msra.mxu0 0
        %695 = vmatprep.subr.bf16.mxu0 0
        %696 = vmatpush1.bf16.xpose.msra.mxu0 0
        %697 = vmatprep.subr.bf16.mxu0 0
        %698 = vmatpush1.bf16.xpose.msra.mxu0 0
        %699 = vmatprep.subr.bf16.mxu0 0
        %700 = vmatpush1.bf16.xpose.msra.mxu0 0
        %701 = vmatprep.subr.bf16.mxu0 0
        %702 = vmatpush1.bf16.xpose.msra.mxu0 0
        %703 = vmatprep.subr.bf16.mxu0 0
        %704 = vmatpush1.bf16.xpose.msra.mxu0 0
        %705 = vmatprep.subr.bf16.mxu0 0
        %706 = vmatpush1.bf16.xpose.msra.mxu0 0
        %707 = vmatprep.subr.bf16.mxu0 0
        %708 = vmatpush1.bf16.xpose.msra.mxu0 0
        %709 = vmatprep.subr.bf16.mxu0 0
        %710 = vmatpush1.bf16.xpose.msra.mxu0 0
        %711 = vmatprep.subr.bf16.mxu0 0
        %712 = vmatpush1.bf16.xpose.msra.mxu0 0
        %713 = vmatprep.subr.bf16.mxu0 0
        %714 = vmatpush1.bf16.xpose.msra.mxu0 0
        %715 = vmatprep.subr.bf16.mxu0 0
        %716 = vmatpush1.bf16.xpose.msra.mxu0 0
        %717 = vmatprep.subr.bf16.mxu0 0
        %718 = vmatpush1.bf16.xpose.msra.mxu0 0
        %719 = vmatprep.subr.bf16.mxu0 0
        %720 = vmatpush1.bf16.xpose.msra.mxu0 0
        %721 = vmatprep.subr.bf16.mxu0 0
        %722 = vmatpush1.bf16.xpose.msra.mxu0 0
        %723 = vmatprep.mubr.bf16.mxu0 0
        %724 = vmatmul.mubr.bf16.gmra.mrb[0].mxu0 %v686
        %v725 = vpop.f32.mrb[0].mxu0
        %v726 = vadd.f32 %v448, %v725
        %v727 = vpop.f32.mrb[0].mxu0
        %v728 = vpop.f32.mrb[0].mxu0
        %v729 = vpop.f32.mrb[0].mxu0
        %730 = vdwg.mxu0
        %v731 = vsel %vm497, %v726, -inf
        %732 = vmax.xlane.f32.xlu0 %v731
        %v733 = vpop.xlane.xlu0 %732
        %v734 = vsub.f32 %v726, %v733
        %v735 = vpack.c.bf16 %v734, %v734
        %v737 = vmul.bf16 %v735, 1069105081
        %v738 = vpow.bf16.pop %v737
        %v739 = vunpack.c.l.bf16 %v738
        %v740 = vsel %vm497, %v739, 0.0
        %741 = vadd.xlane.f32.xlu0 %v740
        %v742 = vpop.xlane.xlu0 %741
        %743 = vrot.lane.b32.xlu0 %v679, 80
        %v744 = vpop.permute.xlu0 %743
        %v747 = vsel %vm497, %v738, 0
        %749 = vmatprep.subr.bf16.mxu0 0
        %750 = vmatpush1.bf16.msra.mxu0 %v744
        %751 = vmatprep.subr.bf16.mxu0 0
        %752 = vmatpush1.bf16.msra.mxu0 0
        %753 = vmatprep.subr.bf16.mxu0 0
        %754 = vmatpush1.bf16.msra.mxu0 0
        %755 = vmatprep.subr.bf16.mxu0 0
        %756 = vmatpush1.bf16.msra.mxu0 0
        %757 = vmatprep.subr.bf16.mxu0 0
        %758 = vmatpush1.bf16.msra.mxu0 0
        %759 = vmatprep.subr.bf16.mxu0 0
        %760 = vmatpush1.bf16.msra.mxu0 0
        %761 = vmatprep.subr.bf16.mxu0 0
        %762 = vmatpush1.bf16.msra.mxu0 0
        %763 = vmatprep.subr.bf16.mxu0 0
        %764 = vmatpush1.bf16.msra.mxu0 0
        %765 = vmatprep.subr.bf16.mxu0 0
        %766 = vmatpush1.bf16.msra.mxu0 0
        %767 = vmatprep.subr.bf16.mxu0 0
        %768 = vmatpush1.bf16.msra.mxu0 0
        %769 = vmatprep.subr.bf16.mxu0 0
        %770 = vmatpush1.bf16.msra.mxu0 0
        %771 = vmatprep.subr.bf16.mxu0 0
        %772 = vmatpush1.bf16.msra.mxu0 0
        %773 = vmatprep.subr.bf16.mxu0 0
        %774 = vmatpush1.bf16.msra.mxu0 0
        %775 = vmatprep.subr.bf16.mxu0 0
        %776 = vmatpush1.bf16.msra.mxu0 0
        %777 = vmatprep.subr.bf16.mxu0 0
        %778 = vmatpush1.bf16.msra.mxu0 0
        %779 = vmatprep.subr.bf16.mxu0 0
        %780 = vmatpush1.bf16.msra.mxu0 0
        %781 = vmatprep.mubr.bf16.mxu0 0
        %782 = vmatmul.mubr.bf16.gmra.mrb[0].mxu0 %v747
        %v783 = vpop.f32.mrb[0].mxu0
        %v784 = vadd.f32 0.0, %v783
        %v785 = vpop.f32.mrb[0].mxu0
        %v786 = vpop.f32.mrb[0].mxu0
        %v787 = vpop.f32.mrb[0].mxu0
        %788 = vdwg.mxu0
        %v789 = vrcp.pop %v742
        %v790 = vmul.f32 %v784, %v789
        %792 = vrot.lane.b32.xlu0 %v790, 16
        %v793 = vpop.permute.xlu0 %792
        %vm795 = vcmask 195712
        %796 = vst.msk [vmem:[#allocation3] sm:$0xff] %vm795, %v793
        %v797 = vld [vmem:[#allocation2] sm:$0xff]
        %798 = vrot.lane.b32.xlu0 %v441, 104
        %v799 = vpop.permute.xlu0 %798
        %801 = vrot.lane.b32.xlu0 %v797, 104
        %v802 = vpop.permute.xlu0 %801
        %v804 = vsel %vm450, %v799, 0
        %v807 = vsel %vm450, %v802, 0
        %809 = vmatprep.subr.bf16.mxu0 0
        %810 = vmatpush1.bf16.xpose.msra.mxu0 %v807
        %811 = vmatprep.subr.bf16.mxu0 0
        %812 = vmatpush1.bf16.xpose.msra.mxu0 0
        %813 = vmatprep.subr.bf16.mxu0 0
        %814 = vmatpush1.bf16.xpose.msra.mxu0 0
        %815 = vmatprep.subr.bf16.mxu0 0
        %816 = vmatpush1.bf16.xpose.msra.mxu0 0
        %817 = vmatprep.subr.bf16.mxu0 0
        %818 = vmatpush1.bf16.xpose.msra.mxu0 0
        %819 = vmatprep.subr.bf16.mxu0 0
        %820 = vmatpush1.bf16.xpose.msra.mxu0 0
        %821 = vmatprep.subr.bf16.mxu0 0
        %822 = vmatpush1.bf16.xpose.msra.mxu0 0
        %823 = vmatprep.subr.bf16.mxu0 0
        %824 = vmatpush1.bf16.xpose.msra.mxu0 0
        %825 = vmatprep.subr.bf16.mxu0 0
        %826 = vmatpush1.bf16.xpose.msra.mxu0 0
        %827 = vmatprep.subr.bf16.mxu0 0
        %828 = vmatpush1.bf16.xpose.msra.mxu0 0
        %829 = vmatprep.subr.bf16.mxu0 0
        %830 = vmatpush1.bf16.xpose.msra.mxu0 0
        %831 = vmatprep.subr.bf16.mxu0 0
        %832 = vmatpush1.bf16.xpose.msra.mxu0 0
        %833 = vmatprep.subr.bf16.mxu0 0
        %834 = vmatpush1.bf16.xpose.msra.mxu0 0
        %835 = vmatprep.subr.bf16.mxu0 0
        %836 = vmatpush1.bf16.xpose.msra.mxu0 0
        %837 = vmatprep.subr.bf16.mxu0 0
        %838 = vmatpush1.bf16.xpose.msra.mxu0 0
        %839 = vmatprep.subr.bf16.mxu0 0
        %840 = vmatpush1.bf16.xpose.msra.mxu0 0
        %841 = vmatprep.mubr.bf16.mxu0 0
        %842 = vmatmul.mubr.bf16.gmra.mrb[0].mxu0 %v804
        %v843 = vpop.f32.mrb[0].mxu0
        %v844 = vadd.f32 %v448, %v843
        %v845 = vpop.f32.mrb[0].mxu0
        %v846 = vpop.f32.mrb[0].mxu0
        %v847 = vpop.f32.mrb[0].mxu0
        %848 = vdwg.mxu0
        %v849 = vsel %vm497, %v844, -inf
        %850 = vmax.xlane.f32.xlu0 %v849
        %v851 = vpop.xlane.xlu0 %850
        %v852 = vsub.f32 %v844, %v851
        %v853 = vpack.c.bf16 %v852, %v852
        %v855 = vmul.bf16 %v853, 1069105081
        %v856 = vpow.bf16.pop %v855
        %v857 = vunpack.c.l.bf16 %v856
        %v858 = vsel %vm497, %v857, 0.0
        %859 = vadd.xlane.f32.xlu0 %v858
        %v860 = vpop.xlane.xlu0 %859
        %861 = vrot.lane.b32.xlu0 %v797, 72
        %v862 = vpop.permute.xlu0 %861
        %v865 = vsel %vm497, %v856, 0
        %867 = vmatprep.subr.bf16.mxu0 0
        %868 = vmatpush1.bf16.msra.mxu0 %v862
        %869 = vmatprep.subr.bf16.mxu0 0
        %870 = vmatpush1.bf16.msra.mxu0 0
        %871 = vmatprep.subr.bf16.mxu0 0
        %872 = vmatpush1.bf16.msra.mxu0 0
        %873 = vmatprep.subr.bf16.mxu0 0
        %874 = vmatpush1.bf16.msra.mxu0 0
        %875 = vmatprep.subr.bf16.mxu0 0
        %876 = vmatpush1.bf16.msra.mxu0 0
        %877 = vmatprep.subr.bf16.mxu0 0
        %878 = vmatpush1.bf16.msra.mxu0 0
        %879 = vmatprep.subr.bf16.mxu0 0
        %880 = vmatpush1.bf16.msra.mxu0 0
        %881 = vmatprep.subr.bf16.mxu0 0
        %882 = vmatpush1.bf16.msra.mxu0 0
        %883 = vmatprep.subr.bf16.mxu0 0
        %884 = vmatpush1.bf16.msra.mxu0 0
        %885 = vmatprep.subr.bf16.mxu0 0
        %886 = vmatpush1.bf16.msra.mxu0 0
        %887 = vmatprep.subr.bf16.mxu0 0
        %888 = vmatpush1.bf16.msra.mxu0 0
        %889 = vmatprep.subr.bf16.mxu0 0
        %890 = vmatpush1.bf16.msra.mxu0 0
        %891 = vmatprep.subr.bf16.mxu0 0
        %892 = vmatpush1.bf16.msra.mxu0 0
        %893 = vmatprep.subr.bf16.mxu0 0
        %894 = vmatpush1.bf16.msra.mxu0 0
        %895 = vmatprep.subr.bf16.mxu0 0
        %896 = vmatpush1.bf16.msra.mxu0 0
        %897 = vmatprep.subr.bf16.mxu0 0
        %898 = vmatpush1.bf16.msra.mxu0 0
        %899 = vmatprep.mubr.bf16.mxu0 0
        %900 = vmatmul.mubr.bf16.gmra.mrb[0].mxu0 %v865
        %v901 = vpop.f32.mrb[0].mxu0
        %v902 = vadd.f32 0.0, %v901
        %v903 = vpop.f32.mrb[0].mxu0
        %v904 = vpop.f32.mrb[0].mxu0
        %v905 = vpop.f32.mrb[0].mxu0
        %906 = vdwg.mxu0
        %v907 = vrcp.pop %v860
        %v908 = vmul.f32 %v902, %v907
        %910 = vrot.lane.b32.xlu0 %v908, 24
        %v911 = vpop.permute.xlu0 %910
        %vm913 = vcmask 261312
        %914 = vst.msk [vmem:[#allocation3] sm:$0xff] %vm913, %v911
        %v915 = vld [vmem:[#allocation3] sm:$0xff]
        %916 = vst.msk [vmem:[%s283] sm:$0xff] %vm397, %v915
        %s917 = sand.u32 %s157, 1
        %s918 = scalar_lea.sflag [#allocation6], %s917
        %s919 = sand.u32 %s157, 1
        %s920 = smul.addr %s919, 8
        %s921 = scalar_lea.vmem [#allocation9], %s920
        // Predicated region
        $region49: #{tpu_custom_call.1} parent=35 // pred_check
          %p922 = pneg %p167
        $region50: #{tpu_custom_call.1} parent=35 // pred_check_branch
          %924 = sbr.rel (%p922) target = $region52
        $region51: #{tpu_custom_call.1} parent=35 // pred_region
          %s926 = ssub.s32 128, 128
          %927 = vsyncadd %s918, %s926
          %s928 = sadd.s32 %s27, %s29
          %s929 = smul.addr %s28, 2
          %s930 = sadd.s32 %s928, %s929
          %s931 = smul.addr %s930, 128
          %s932 = scalar_lea.hbm %s4, %s931
          %s934 = sshll.u32 %s921, 4
          %s935 = int_to_ptr.vmem [resolvable:$true] %s934
          %937 = dma.vmem_to_hbm [thread:$0]  %s935, 128, %s932, %s918
        $region52: #{tpu_custom_call.1} parent=35 // pred_fallthru
          _
      $region36: #{tpu_custom_call.1} parent=5 // pred_fallthru
        _
      %p938 = scmp.le.s32.totalorder 2, %s17
      // Predicated region
      $region53: #{tpu_custom_call.1} parent=5 // pred_check
        %p939 = pneg %p938
      $region54: #{tpu_custom_call.1} parent=5 // pred_check_branch
        %941 = sbr.rel (%p939) target = $region56
      $region55: #{tpu_custom_call.1} parent=5 // pred_region
        %s942 = ssub.s32 %s17, 2
        // Predicated region
        $region57: #{tpu_custom_call.1} parent=55 // pred_check
          %p943 = pneg %p173
        $region58: #{tpu_custom_call.1} parent=55 // pred_check_branch
          %945 = sbr.rel (%p943) target = $region60
        $region59: #{tpu_custom_call.1} parent=55 // pred_region
          %s946 = sand.u32 %s158, 1
          %s947 = scalar_lea.sflag [#allocation6], %s946
          %s948 = sand.u32 %s158, 1
          %s949 = smul.addr %s948, 8
          %s950 = scalar_lea.vmem [#allocation9], %s949
          %951 = dma.done %s947, 128
        $region60: #{tpu_custom_call.1} parent=55 // pred_fallthru
          _
      $region56: #{tpu_custom_call.1} parent=5 // pred_fallthru
        _
    $region6: #{tpu_custom_call.1} parent=1 // loop_footer
      %s21 = sadd.s32 1, %s17
    $region7: #{tpu_custom_call.1} parent=1 // loop_footer_branch
      %16 = sbr.rel target = $region3
    $region8: #{tpu_custom_call.1} parent=1 // loop_exit
      _
    %952 = vsyncpa [#allocation5], 1
    %s953 = scalar_lea.sflag [#allocation5], 1
    %954 = vsyncpa %s953, 1
    %955 = vsyncpa [#allocation8], 1
    %956 = vsyncpa [#allocation6], 1
    %s957 = scalar_lea.sflag [#allocation6], 1
    %958 = vsyncpa %s957, 1

</llo_original>
